<compile_context>
chip_gen: v7x
topology: tpu7x:2x2x1
jax: 0.10.0
libtpu: 0.0.40
codegen_flags: <defaults>
</compile_context>

<pallas_src>
import jax
import jax.numpy as jnp
from jax.experimental import pallas as pl
from jax.experimental.pallas import tpu as pltpu


def _round_up(a: int, b: int) -> int:
    return (a + b - 1) // b * b


def gnn_layer_kernel(x_ref, adj_ref, ws_ref, wn_ref, wro_ref, o_ref):
    """One grid step computes a (tm, D_pad) slab of output rows.

    x_ref   : [N_pad, D_in]   node features, resident across the grid
    adj_ref : [tm, N_pad]     row slab of the adjacency matrix
    ws_ref  : [D_in, D_pad]   w_self    (cols zero-padded to 128 multiple)
    wn_ref  : [D_in, D_pad]   w_neigh   (cols zero-padded)
    wro_ref : [D_in, D_pad]   w_readout (cols zero-padded)
    o_ref   : [tm, D_pad]     output slab (f32)
    """
    i = pl.program_id(0)
    tm = o_ref.shape[0]

    x_full = x_ref[...]                                       # [N_pad, D_in]
    row0 = pl.multiple_of(i * tm, 8)
    x_rows = x_ref[pl.ds(row0, tm), :]                        # [tm, D_in]

    # neighbor aggregation: the dominant MXU matmul (K = N_pad), f32 accumulate
    neigh = jnp.dot(adj_ref[...], x_full,
                    preferred_element_type=jnp.float32)       # [tm, D_in]

    # self + neighbor projections (two small K = D_in MXU matmuls)
    out = jnp.dot(x_rows, ws_ref[...],
                  preferred_element_type=jnp.float32)         # [tm, D_pad]
    out = out + jnp.dot(neigh.astype(wn_ref.dtype), wn_ref[...],
                        preferred_element_type=jnp.float32)   # [tm, D_pad]

    # readout: ones(N,N) @ x  ==  broadcast of the column-sum of x
    s = jnp.sum(x_full.astype(jnp.float32), axis=0, keepdims=True)   # [1, D_in]
    r = jnp.dot(s.astype(wro_ref.dtype), wro_ref[...],
                preferred_element_type=jnp.float32)           # [1, D_pad]

    o_ref[...] = (out + r).astype(o_ref.dtype)                # broadcast add


def base_gnn_layer(node_feats, adj_matrix, w_self, w_neigh, w_readout,
                   *, compute_dtype=jnp.bfloat16, block_rows=256):
    N, d_in = node_feats.shape
    d_out = w_self.shape[1]
    cdt = jnp.dtype(compute_dtype)
    isz = cdt.itemsize

    # lane-dense output: pad D_out up to a multiple of 128
    d_pad = _round_up(d_out, 128)

    # row tile (multiple of 8 sublanes), capped so the double-buffered adj
    # row slab stays under ~16 MiB of VMEM even for large N
    n_est = _round_up(N, 8)
    max_tm = max(8, ((16 << 20) // max(1, 2 * n_est * isz)) // 8 * 8)
    tm = min(_round_up(block_rows, 8), n_est, max_tm)
    n_pad = _round_up(N, tm)

    x = jnp.zeros((n_pad, d_in), cdt).at[:N, :].set(node_feats.astype(cdt))
    adj = jnp.zeros((n_pad, n_pad), cdt).at[:N, :N].set(adj_matrix.astype(cdt))

    w_s = jnp.zeros((d_in, d_pad), cdt).at[:, :d_out].set(w_self.astype(cdt))
    w_n = jnp.zeros((d_in, d_pad), cdt).at[:, :d_out].set(w_neigh.astype(cdt))
    w_r = jnp.zeros((d_in, d_pad), cdt).at[:, :d_out].set(w_readout.astype(cdt))

    grid = (n_pad // tm,)

    # scoped-VMEM budget: adj slab (double-buffered) + resident x/weights + out
    vmem_need = (2 * tm * n_pad * isz          # adj row slab, double buffer
                 + 2 * n_pad * d_in * isz      # x (resident, 2 buffers)
                 + 2 * 3 * d_in * d_pad * isz  # weights (resident, 2 buffers)
                 + 2 * tm * d_pad * 4          # f32 output slab, double buffer
                 + 2 * tm * d_pad * 4)         # intermediates headroom
    vmem_limit = int(min(max(2 * vmem_need, 16 << 20), 64 << 20))

    out = pl.pallas_call(
        gnn_layer_kernel,
        out_shape=jax.ShapeDtypeStruct((n_pad, d_pad), jnp.float32),
        grid_spec=pltpu.PrefetchScalarGridSpec(
            num_scalar_prefetch=0,
            grid=grid,
            in_specs=[
                pl.BlockSpec((n_pad, d_in), lambda i: (0, 0)),  # x (resident)
                pl.BlockSpec((tm, n_pad), lambda i: (i, 0)),    # adj row slab
                pl.BlockSpec((d_in, d_pad), lambda i: (0, 0)),  # w_self
                pl.BlockSpec((d_in, d_pad), lambda i: (0, 0)),  # w_neigh
                pl.BlockSpec((d_in, d_pad), lambda i: (0, 0)),  # w_readout
            ],
            out_specs=pl.BlockSpec((tm, d_pad), lambda i: (i, 0)),
        ),
        compiler_params=pltpu.CompilerParams(
            dimension_semantics=("parallel",),
            vmem_limit_bytes=vmem_limit,
        ),
    )(x, adj, w_s, w_n, w_r)

    return out[:N, :d_out].astype(node_feats.dtype)


def reference(node_feats, adj_matrix, w_self, w_neigh, w_readout):
    N = adj_matrix.shape[0]
    nf_self = node_feats @ w_self
    nf_neigh = (adj_matrix @ node_feats) @ w_neigh
    nf_readout = (jnp.ones((N, N), node_feats.dtype) @ node_feats) @ w_readout
    return nf_self + nf_neigh + nf_readout


if __name__ == "__main__":
    # Small, deterministic synthetic problem (matches the module's torch.mm use).
    N = 16          # number of nodes
    input_dim = 32
    output_dim = 32

    key = jax.random.PRNGKey(0)
    k_x, k_a, k_ws, k_wn, k_wr = jax.random.split(key, 5)

    node_feats = jax.random.normal(k_x, (N, input_dim), dtype=jnp.float32)
    # simple symmetric binary adjacency with self loops
    adj_rand = jax.random.uniform(k_a, (N, N))
    adj_matrix = (adj_rand > 0.7).astype(jnp.float32)
    adj_matrix = jnp.maximum(adj_matrix, adj_matrix.T)
    adj_matrix = adj_matrix.at[jnp.arange(N), jnp.arange(N)].set(1.0)

    # Matches torch: w = -2*lim*rand + lim  ->  Uniform(-1, 1)
    w_self = jax.random.uniform(k_ws, (input_dim, output_dim),
                                minval=-1.0, maxval=1.0, dtype=jnp.float32)
    w_neigh = jax.random.uniform(k_wn, (input_dim, output_dim),
                                 minval=-1.0, maxval=1.0, dtype=jnp.float32)
    w_readout = jax.random.uniform(k_wr, (input_dim, output_dim),
                                   minval=-1.0, maxval=1.0, dtype=jnp.float32)

    ref = reference(node_feats, adj_matrix, w_self, w_neigh, w_readout)

    # Exact-math path (f32 on the MXU): tight tolerance vs the f32 reference.
    out_f32 = base_gnn_layer(node_feats, adj_matrix, w_self, w_neigh, w_readout,
                             compute_dtype=jnp.float32)
    out_f32 = jax.block_until_ready(out_f32)
    assert out_f32.shape == (N, output_dim)
    assert jnp.allclose(out_f32, ref, atol=1e-3, rtol=1e-3), \
        "f32 kernel mismatch vs reference"

    # Default MXU-friendly path (bf16 inputs, f32 accumulation): looser tolerance
    # because x / weights / the adj@x intermediate are quantized to bf16.
    out_bf16 = base_gnn_layer(node_feats, adj_matrix, w_self, w_neigh, w_readout)
    out_bf16 = jax.block_until_ready(out_bf16)
    assert out_bf16.shape == (N, output_dim)
    assert jnp.allclose(out_bf16, ref, atol=5e-1, rtol=5e-2), \
        "bf16 kernel mismatch vs reference"

    print("KERNEL_OK")
</pallas_src>

<mosaic_0001>
module attributes {stable_mosaic.version = 11 : i64} {
  func.func @gnn_layer_kernel(%arg0: i32, %arg1: memref<16x32xf32, #tpu.memory_space<vmem>>, %arg2: memref<16x16xf32, #tpu.memory_space<vmem>>, %arg3: memref<32x128xf32, #tpu.memory_space<vmem>>, %arg4: memref<32x128xf32, #tpu.memory_space<vmem>>, %arg5: memref<32x128xf32, #tpu.memory_space<vmem>>, %arg6: memref<16x128xf32, #tpu.memory_space<vmem>>) attributes {dimension_semantics = [#tpu.dimension_semantics<parallel>], iteration_bounds = array<i64: 1>, scalar_prefetch = 0 : i64, scratch_operands = 0 : i64, tpu.core_type = #tpu.core_type<tc>, window_params = [{pipeline_mode = #tpu.pipeline_mode<synchronous>, transform_indices = @transform_0, window_bounds = array<i64: 16, 32>}, {transform_indices = @transform_1, window_bounds = array<i64: 16, 16>}, {pipeline_mode = #tpu.pipeline_mode<synchronous>, transform_indices = @transform_2, window_bounds = array<i64: 32, 128>}, {pipeline_mode = #tpu.pipeline_mode<synchronous>, transform_indices = @transform_3, window_bounds = array<i64: 32, 128>}, {pipeline_mode = #tpu.pipeline_mode<synchronous>, transform_indices = @transform_4, window_bounds = array<i64: 32, 128>}, {transform_indices = @transform_5, window_bounds = array<i64: 16, 128>}]} {
    %c0 = arith.constant 0 : index
    %c0_0 = arith.constant 0 : index
    %0 = vector.load %arg1[%c0, %c0_0] : memref<16x32xf32, #tpu.memory_space<vmem>>, vector<16x32xf32>
    %c16_i32 = arith.constant 16 : i32
    %1 = arith.muli %arg0, %c16_i32 : i32
    %2 = tpu.assume_multiple %1, 8 : i32
    %3 = arith.index_cast %2 : i32 to index
    %c0_1 = arith.constant 0 : index
    %4 = vector.load %arg1[%3, %c0_1] : memref<16x32xf32, #tpu.memory_space<vmem>>, vector<16x32xf32>
    %c0_2 = arith.constant 0 : index
    %c0_3 = arith.constant 0 : index
    %5 = vector.load %arg2[%c0_2, %c0_3] : memref<16x16xf32, #tpu.memory_space<vmem>>, vector<16x16xf32>
    %cst = arith.constant dense<0.000000e+00> : vector<16x32xf32>
    %6 = tpu.matmul %5, %0, %cst {dimension_numbers = #tpu.dot_dimension_numbers<[1], [0], [0], [1], [0, 0, 1, 1], [], []>} : vector<16x16xf32>, vector<16x32xf32>, vector<16x32xf32> -> vector<16x32xf32>
    %c0_4 = arith.constant 0 : index
    %c0_5 = arith.constant 0 : index
    %7 = vector.load %arg3[%c0_4, %c0_5] : memref<32x128xf32, #tpu.memory_space<vmem>>, vector<32x128xf32>
    %cst_6 = arith.constant dense<0.000000e+00> : vector<16x128xf32>
    %8 = tpu.matmul %4, %7, %cst_6 {dimension_numbers = #tpu.dot_dimension_numbers<[1], [0], [0], [1], [0, 0, 1, 1], [], []>} : vector<16x32xf32>, vector<32x128xf32>, vector<16x128xf32> -> vector<16x128xf32>
    %c0_7 = arith.constant 0 : index
    %c0_8 = arith.constant 0 : index
    %9 = vector.load %arg4[%c0_7, %c0_8] : memref<32x128xf32, #tpu.memory_space<vmem>>, vector<32x128xf32>
    %cst_9 = arith.constant dense<0.000000e+00> : vector<16x128xf32>
    %10 = tpu.matmul %6, %9, %cst_9 {dimension_numbers = #tpu.dot_dimension_numbers<[1], [0], [0], [1], [0, 0, 1, 1], [], []>} : vector<16x32xf32>, vector<32x128xf32>, vector<16x128xf32> -> vector<16x128xf32>
    %11 = arith.addf %8, %10 : vector<16x128xf32>
    %cst_10 = arith.constant dense<0.000000e+00> : vector<32xf32>
    %12 = vector.multi_reduction <add>, %0, %cst_10 [0] : vector<16x32xf32> to vector<32xf32>
    %13 = vector.shape_cast %12 : vector<32xf32> to vector<1x32xf32>
    %c0_11 = arith.constant 0 : index
    %c0_12 = arith.constant 0 : index
    %14 = vector.load %arg5[%c0_11, %c0_12] : memref<32x128xf32, #tpu.memory_space<vmem>>, vector<32x128xf32>
    %cst_13 = arith.constant dense<0.000000e+00> : vector<1x128xf32>
    %15 = tpu.matmul %13, %14, %cst_13 {dimension_numbers = #tpu.dot_dimension_numbers<[1], [0], [0], [1], [0, 0, 1, 1], [], []>} : vector<1x32xf32>, vector<32x128xf32>, vector<1x128xf32> -> vector<1x128xf32>
    %16 = vector.broadcast %15 : vector<1x128xf32> to vector<16x128xf32>
    %17 = arith.addf %11, %16 : vector<16x128xf32>
    %c0_14 = arith.constant 0 : index
    %c0_15 = arith.constant 0 : index
    %18 = vector.load %arg6[%c0_14, %c0_15] : memref<16x128xf32, #tpu.memory_space<vmem>>, vector<16x128xf32>
    tpu.vector_store %arg6[%c0_14, %c0_15], %17 {strides = array<i32>} : memref<16x128xf32, #tpu.memory_space<vmem>>, vector<16x128xf32>,
    return
  }
  func.func @transform_0(%arg0: i32) -> (i32, i32) {
    %c0_i32 = arith.constant 0 : i32
    %c0_i32_0 = arith.constant 0 : i32
    %c0_i32_1 = arith.constant 0 : i32
    return %c0_i32, %c0_i32_0 : i32, i32
  }
  func.func @transform_1(%arg0: i32) -> (i32, i32) {
    %c0_i32 = arith.constant 0 : i32
    %c0_i32_0 = arith.constant 0 : i32
    return %arg0, %c0_i32 : i32, i32
  }
  func.func @transform_2(%arg0: i32) -> (i32, i32) {
    %c0_i32 = arith.constant 0 : i32
    %c0_i32_0 = arith.constant 0 : i32
    %c0_i32_1 = arith.constant 0 : i32
    return %c0_i32, %c0_i32_0 : i32, i32
  }
  func.func @transform_3(%arg0: i32) -> (i32, i32) {
    %c0_i32 = arith.constant 0 : i32
    %c0_i32_0 = arith.constant 0 : i32
    %c0_i32_1 = arith.constant 0 : i32
    return %c0_i32, %c0_i32_0 : i32, i32
  }
  func.func @transform_4(%arg0: i32) -> (i32, i32) {
    %c0_i32 = arith.constant 0 : i32
    %c0_i32_0 = arith.constant 0 : i32
    %c0_i32_1 = arith.constant 0 : i32
    return %c0_i32, %c0_i32_0 : i32, i32
  }
  func.func @transform_5(%arg0: i32) -> (i32, i32) {
    %c0_i32 = arith.constant 0 : i32
    %c0_i32_0 = arith.constant 0 : i32
    return %arg0, %c0_i32 : i32, i32
  }
}

</mosaic_0001>

<llo_original>
// kernel: tpu_custom_call.1
$region0: #{tpu_custom_call.1}
  #allocation0 [shape = 'u32[]', space=smem, size = 0x4, offset = 0x4, fixed_abs, tag = 'smem constant byte address 0x4 - core index']
  #allocation1 [shape = 'u32[144,128]{1,0:T(1,128)}', space=vmem, size = 0x12000, scoped, tag = 'internal scratch']
  %s0 = inlined_call_operand.hbm [shape: f32[16,32], index: 0, kind: input, shape index: {}]
  %s1 = inlined_call_operand.hbm [shape: f32[16,16], index: 1, kind: input, shape index: {}]
  %s2 = inlined_call_operand.hbm [shape: f32[32,128], index: 2, kind: input, shape index: {}]
  %s3 = inlined_call_operand.hbm [shape: f32[32,128], index: 3, kind: input, shape index: {}]
  %s4 = inlined_call_operand.hbm [shape: f32[32,128], index: 4, kind: input, shape index: {}]
  %s5 = inlined_call_operand.hbm [shape: f32[16,128], index: 5, kind: output, shape index: {}]
  %s6 = sld [smem:[#allocation0]]
  $region50: #{tpu_custom_call.1} parent=0
    _
  %s8 = ssub.s32 1, %s6
  %s9 = scalar_select 0, %s8, %s6
  $region1: #{tpu_custom_call.1} parent=0
    #allocation2 [shape = 'u8[8192]{0}', space=vmem, size = 0x2000, scoped, tag = 'input window, operand 0, single buffered']
    #allocation3 [shape = 's32[1]{0}', space=sflag, size = 0x4, scoped, tag = 'scoped memory for tpu_custom_call.1']
    #allocation4 [shape = 's32[1]{0}', space=sflag, size = 0x4, scoped, tag = 'scoped memory for tpu_custom_call.1']
    #allocation5 [shape = 'u8[8192]{0}', space=vmem, size = 0x2000, scoped, tag = 'input window, operand 1, single buffered']
    #allocation6 [shape = 's32[1]{0}', space=sflag, size = 0x4, scoped, tag = 'scoped memory for tpu_custom_call.1']
    #allocation7 [shape = 'u8[16384]{0}', space=vmem, size = 0x4000, scoped, tag = 'input window, operand 2, single buffered']
    #allocation8 [shape = 'u8[16384]{0}', space=vmem, size = 0x4000, scoped, tag = 'input window, operand 3, single buffered']
    #allocation9 [shape = 's32[1]{0}', space=sflag, size = 0x4, scoped, tag = 'scoped memory for tpu_custom_call.1']
    #allocation10 [shape = 'u8[16384]{0}', space=vmem, size = 0x4000, scoped, tag = 'input window, operand 4, single buffered']
    #allocation11 [shape = 'u8[8192]{0}', space=vmem, size = 0x2000, scoped, tag = 'output window, operand 0, single buffered']
    %10 = vsyncpa [#allocation3], 0
    %11 = vsyncpa [#allocation6], 0
    %12 = vsyncpa [#allocation9], 0
    %13 = vsyncpa [#allocation4], 0
    // Predicated region
    $region2: #{tpu_custom_call.1} parent=1 // pred_check
      _
    $region3: #{tpu_custom_call.1} parent=1 // pred_check_branch
      %15 = sbr.rel (0) target = $region5
    $region4: #{tpu_custom_call.1} parent=1 // pred_region
      %s17 = ssub.s32 256, 256
      %18 = vsyncadd [#allocation3], %s17
      %s19 = sshll.u32 [#allocation2], 4
      %s20 = int_to_ptr.vmem [resolvable:$true] %s19
      %25 = dma.hbm_to_vmem [thread:$0]  %s0, 256, %s20, [#allocation3], 128, 128, 8
    $region5: #{tpu_custom_call.1} parent=1 // pred_fallthru
      _
    // Predicated region
    $region6: #{tpu_custom_call.1} parent=1 // pred_check
      _
    $region7: #{tpu_custom_call.1} parent=1 // pred_check_branch
      %27 = sbr.rel (0) target = $region9
    $region8: #{tpu_custom_call.1} parent=1 // pred_region
      %s29 = ssub.s32 256, 256
      %30 = vsyncadd [#allocation6], %s29
      %s31 = sshll.u32 [#allocation5], 4
      %s32 = int_to_ptr.vmem [resolvable:$true] %s31
      %37 = dma.hbm_to_vmem [thread:$0]  %s1, 256, %s32, [#allocation6], 128, 128, 8
    $region9: #{tpu_custom_call.1} parent=1 // pred_fallthru
      _
    // Predicated region
    $region10: #{tpu_custom_call.1} parent=1 // pred_check
      _
    $region11: #{tpu_custom_call.1} parent=1 // pred_check_branch
      %39 = sbr.rel (0) target = $region13
    $region12: #{tpu_custom_call.1} parent=1 // pred_region
      %s41 = ssub.s32 512, 512
      %42 = vsyncadd [#allocation6], %s41
      %s43 = sshll.u32 [#allocation7], 4
      %s44 = int_to_ptr.vmem [resolvable:$true] %s43
      %49 = dma.hbm_to_vmem [thread:$0]  %s2, 512, %s44, [#allocation6], 128, 128, 8
    $region13: #{tpu_custom_call.1} parent=1 // pred_fallthru
      _
    // Predicated region
    $region14: #{tpu_custom_call.1} parent=1 // pred_check
      _
    $region15: #{tpu_custom_call.1} parent=1 // pred_check_branch
      %51 = sbr.rel (0) target = $region17
    $region16: #{tpu_custom_call.1} parent=1 // pred_region
      %s53 = ssub.s32 512, 512
      %54 = vsyncadd [#allocation9], %s53
      %s55 = sshll.u32 [#allocation8], 4
      %s56 = int_to_ptr.vmem [resolvable:$true] %s55
      %61 = dma.hbm_to_vmem [thread:$0]  %s3, 512, %s56, [#allocation9], 128, 128, 8
    $region17: #{tpu_custom_call.1} parent=1 // pred_fallthru
      _
    // Predicated region
    $region18: #{tpu_custom_call.1} parent=1 // pred_check
      _
    $region19: #{tpu_custom_call.1} parent=1 // pred_check_branch
      %63 = sbr.rel (0) target = $region21
    $region20: #{tpu_custom_call.1} parent=1 // pred_region
      %s65 = ssub.s32 512, 512
      %66 = vsyncadd [#allocation9], %s65
      %s67 = sshll.u32 [#allocation10], 4
      %s68 = int_to_ptr.vmem [resolvable:$true] %s67
      %73 = dma.hbm_to_vmem [thread:$0]  %s4, 512, %s68, [#allocation9], 128, 128, 8
    $region21: #{tpu_custom_call.1} parent=1 // pred_fallthru
      _
    // Predicated region
    $region22: #{tpu_custom_call.1} parent=1 // pred_check
      _
    $region23: #{tpu_custom_call.1} parent=1 // pred_check_branch
      %75 = sbr.rel (0) target = $region25
    $region24: #{tpu_custom_call.1} parent=1 // pred_region
      %76 = dma.done [#allocation3], 256
    $region25: #{tpu_custom_call.1} parent=1 // pred_fallthru
      _
    // Predicated region
    $region26: #{tpu_custom_call.1} parent=1 // pred_check
      _
    $region27: #{tpu_custom_call.1} parent=1 // pred_check_branch
      %78 = sbr.rel (0) target = $region29
    $region28: #{tpu_custom_call.1} parent=1 // pred_region
      %79 = dma.done [#allocation6], 256
    $region29: #{tpu_custom_call.1} parent=1 // pred_fallthru
      _
    // Predicated region
    $region30: #{tpu_custom_call.1} parent=1 // pred_check
      _
    $region31: #{tpu_custom_call.1} parent=1 // pred_check_branch
      %81 = sbr.rel (0) target = $region33
    $region32: #{tpu_custom_call.1} parent=1 // pred_region
      %82 = dma.done [#allocation6], 512
    $region33: #{tpu_custom_call.1} parent=1 // pred_fallthru
      _
    // Predicated region
    $region34: #{tpu_custom_call.1} parent=1 // pred_check
      _
    $region35: #{tpu_custom_call.1} parent=1 // pred_check_branch
      %84 = sbr.rel (0) target = $region37
    $region36: #{tpu_custom_call.1} parent=1 // pred_region
      %85 = dma.done [#allocation9], 512
    $region37: #{tpu_custom_call.1} parent=1 // pred_fallthru
      _
    // Predicated region
    $region38: #{tpu_custom_call.1} parent=1 // pred_check
      _
    $region39: #{tpu_custom_call.1} parent=1 // pred_check_branch
      %87 = sbr.rel (0) target = $region41
    $region40: #{tpu_custom_call.1} parent=1 // pred_region
      %88 = dma.done [#allocation9], 512
    $region41: #{tpu_custom_call.1} parent=1 // pred_fallthru
      _
    %v89 = vld [vmem:[#allocation2] sm:$0xff]
    %v90 = vld [vmem:[#allocation2 + $0x8] sm:$0xff]
    %s91 = smul.u32 0, 16
    %s92 = scalar_lea.vmem [#allocation2], %s91
    %v93 = vld [vmem:[%s92] sm:$0xff]
    %v94 = vld [vmem:[%s92 + $0x8] sm:$0xff]
    %v95 = vld [vmem:[#allocation5] sm:$0xff]
    %v96 = vld [vmem:[#allocation5 + $0x8] sm:$0xff]
    %vm97 = vcmask 130048
    %v99 = vsel %vm97, %v95, 0
    %v102 = vsel %vm97, %v96, 0
    %104 = vmatprep.subr.mxu0 0.0
    %105 = vmatpush1.msra.mxu0 %v89
    %106 = vmatprep.subr.mxu0 0.0
    %107 = vmatpush1.msra.mxu0 %v90
    %108 = vmatprep.subr.mxu0 0.0
    %109 = vmatpush1.msra.mxu0 0.0
    %110 = vmatprep.subr.mxu0 0.0
    %111 = vmatpush1.msra.mxu0 0.0
    %112 = vmatprep.subr.mxu0 0.0
    %113 = vmatpush1.msra.mxu0 0.0
    %114 = vmatprep.subr.mxu0 0.0
    %115 = vmatpush1.msra.mxu0 0.0
    %116 = vmatprep.subr.mxu0 0.0
    %117 = vmatpush1.msra.mxu0 0.0
    %118 = vmatprep.subr.mxu0 0.0
    %119 = vmatpush1.msra.mxu0 0.0
    %120 = vmatprep.subr.mxu0 0.0
    %121 = vmatpush1.msra.mxu0 0.0
    %122 = vmatprep.subr.mxu0 0.0
    %123 = vmatpush1.msra.mxu0 0.0
    %124 = vmatprep.subr.mxu0 0.0
    %125 = vmatpush1.msra.mxu0 0.0
    %126 = vmatprep.subr.mxu0 0.0
    %127 = vmatpush1.msra.mxu0 0.0
    %128 = vmatprep.subr.mxu0 0.0
    %129 = vmatpush1.msra.mxu0 0.0
    %130 = vmatprep.subr.mxu0 0.0
    %131 = vmatpush1.msra.mxu0 0.0
    %132 = vmatprep.subr.mxu0 0.0
    %133 = vmatpush1.msra.mxu0 0.0
    %134 = vmatprep.subr.mxu0 0.0
    %135 = vmatpush1.msra.mxu0 0.0
    %136 = vmatprep.subr.mxu0 0.0
    %137 = vmatpush1.msra.mxu0 0.0
    %138 = vmatprep.subr.mxu0 0.0
    %139 = vmatpush1.msra.mxu0 0.0
    %140 = vmatprep.subr.mxu0 0.0
    %141 = vmatpush1.msra.mxu0 0.0
    %142 = vmatprep.subr.mxu0 0.0
    %143 = vmatpush1.msra.mxu0 0.0
    %144 = vmatprep.subr.mxu0 0.0
    %145 = vmatpush1.msra.mxu0 0.0
    %146 = vmatprep.subr.mxu0 0.0
    %147 = vmatpush1.msra.mxu0 0.0
    %148 = vmatprep.subr.mxu0 0.0
    %149 = vmatpush1.msra.mxu0 0.0
    %150 = vmatprep.subr.mxu0 0.0
    %151 = vmatpush1.msra.mxu0 0.0
    %152 = vmatprep.subr.mxu0 0.0
    %153 = vmatpush1.msra.mxu0 0.0
    %154 = vmatprep.subr.mxu0 0.0
    %155 = vmatpush1.msra.mxu0 0.0
    %156 = vmatprep.subr.mxu0 0.0
    %157 = vmatpush1.msra.mxu0 0.0
    %158 = vmatprep.subr.mxu0 0.0
    %159 = vmatpush1.msra.mxu0 0.0
    %160 = vmatprep.subr.mxu0 0.0
    %161 = vmatpush1.msra.mxu0 0.0
    %162 = vmatprep.subr.mxu0 0.0
    %163 = vmatpush1.msra.mxu0 0.0
    %164 = vmatprep.subr.mxu0 0.0
    %165 = vmatpush1.msra.mxu0 0.0
    %166 = vmatprep.subr.mxu0 0.0
    %167 = vmatpush1.msra.mxu0 0.0
    %168 = vmatprep.mubr.f32.mxu0 0.0
    %169 = vmatmul.mubr.f32.gmra.mrb[0].mxu0 %v99
    %v170 = vpop.f32.mrb[0].mxu0
    %v171 = vadd.f32 0.0, %v170
    %v172 = vpop.f32.mrb[0].mxu0
    %173 = vmatprep.mubr.f32.mxu0 0.0
    %174 = vmatmul.mubr.f32.gmra.mrb[0].mxu0 %v102
    %v175 = vpop.f32.mrb[0].mxu0
    %v176 = vadd.f32 0.0, %v175
    %v177 = vpop.f32.mrb[0].mxu0
    %178 = vdwg.mxu0
    %v179 = vld [vmem:[#allocation7] sm:$0xff]
    %v180 = vld [vmem:[#allocation7 + $0x8] sm:$0xff]
    %v181 = vld [vmem:[#allocation7 + $0x10] sm:$0xff]
    %v182 = vld [vmem:[#allocation7 + $0x18] sm:$0xff]
    %v183 = vld [vmem:[#allocation8] sm:$0xff]
    %v184 = vld [vmem:[#allocation8 + $0x8] sm:$0xff]
    %v185 = vld [vmem:[#allocation8 + $0x10] sm:$0xff]
    %v186 = vld [vmem:[#allocation8 + $0x18] sm:$0xff]
    %vm187 = vcmask 261120
    %v189 = vsel %vm187, %v171, 0
    %v192 = vsel %vm187, %v176, 0
    %194 = vmatprep.subr.mxu0 0.0
    %195 = vmatpush1.msra.mxu0 %v183
    %196 = vmatprep.subr.mxu0 0.0
    %197 = vmatpush1.msra.mxu0 %v184
    %198 = vmatprep.subr.mxu0 0.0
    %199 = vmatpush1.msra.mxu0 %v185
    %200 = vmatprep.subr.mxu0 0.0
    %201 = vmatpush1.msra.mxu0 %v186
    %202 = vmatprep.subr.mxu0 0.0
    %203 = vmatpush1.msra.mxu0 0.0
    %204 = vmatprep.subr.mxu0 0.0
    %205 = vmatpush1.msra.mxu0 0.0
    %206 = vmatprep.subr.mxu0 0.0
    %207 = vmatpush1.msra.mxu0 0.0
    %208 = vmatprep.subr.mxu0 0.0
    %209 = vmatpush1.msra.mxu0 0.0
    %210 = vmatprep.subr.mxu0 0.0
    %211 = vmatpush1.msra.mxu0 0.0
    %212 = vmatprep.subr.mxu0 0.0
    %213 = vmatpush1.msra.mxu0 0.0
    %214 = vmatprep.subr.mxu0 0.0
    %215 = vmatpush1.msra.mxu0 0.0
    %216 = vmatprep.subr.mxu0 0.0
    %217 = vmatpush1.msra.mxu0 0.0
    %218 = vmatprep.subr.mxu0 0.0
    %219 = vmatpush1.msra.mxu0 0.0
    %220 = vmatprep.subr.mxu0 0.0
    %221 = vmatpush1.msra.mxu0 0.0
    %222 = vmatprep.subr.mxu0 0.0
    %223 = vmatpush1.msra.mxu0 0.0
    %224 = vmatprep.subr.mxu0 0.0
    %225 = vmatpush1.msra.mxu0 0.0
    %226 = vmatprep.subr.mxu0 0.0
    %227 = vmatpush1.msra.mxu0 0.0
    %228 = vmatprep.subr.mxu0 0.0
    %229 = vmatpush1.msra.mxu0 0.0
    %230 = vmatprep.subr.mxu0 0.0
    %231 = vmatpush1.msra.mxu0 0.0
    %232 = vmatprep.subr.mxu0 0.0
    %233 = vmatpush1.msra.mxu0 0.0
    %234 = vmatprep.subr.mxu0 0.0
    %235 = vmatpush1.msra.mxu0 0.0
    %236 = vmatprep.subr.mxu0 0.0
    %237 = vmatpush1.msra.mxu0 0.0
    %238 = vmatprep.subr.mxu0 0.0
    %239 = vmatpush1.msra.mxu0 0.0
    %240 = vmatprep.subr.mxu0 0.0
    %241 = vmatpush1.msra.mxu0 0.0
    %242 = vmatprep.subr.mxu0 0.0
    %243 = vmatpush1.msra.mxu0 0.0
    %244 = vmatprep.subr.mxu0 0.0
    %245 = vmatpush1.msra.mxu0 0.0
    %246 = vmatprep.subr.mxu0 0.0
    %247 = vmatpush1.msra.mxu0 0.0
    %248 = vmatprep.subr.mxu0 0.0
    %249 = vmatpush1.msra.mxu0 0.0
    %250 = vmatprep.subr.mxu0 0.0
    %251 = vmatpush1.msra.mxu0 0.0
    %252 = vmatprep.subr.mxu0 0.0
    %253 = vmatpush1.msra.mxu0 0.0
    %254 = vmatprep.subr.mxu0 0.0
    %255 = vmatpush1.msra.mxu0 0.0
    %256 = vmatprep.subr.mxu0 0.0
    %257 = vmatpush1.msra.mxu0 0.0
    %258 = vmatprep.mubr.f32.mxu0 0.0
    %259 = vmatmul.mubr.f32.gmra.mrb[0].mxu0 %v189
    %v260 = vpop.f32.mrb[0].mxu0
    %v261 = vadd.f32 0.0, %v260
    %v262 = vpop.f32.mrb[0].mxu0
    %263 = vmatprep.mubr.f32.mxu0 0.0
    %264 = vmatmul.mubr.f32.gmra.mrb[0].mxu0 %v192
    %v265 = vpop.f32.mrb[0].mxu0
    %v266 = vadd.f32 0.0, %v265
    %v267 = vpop.f32.mrb[0].mxu0
    %268 = vdwg.mxu0
    %v270 = vsel %vm187, %v93, 0
    %v273 = vsel %vm187, %v94, 0
    %275 = vmatprep.subr.mxu0 0.0
    %276 = vmatpush1.msra.mxu0 %v179
    %277 = vmatprep.subr.mxu0 0.0
    %278 = vmatpush1.msra.mxu0 %v180
    %279 = vmatprep.subr.mxu0 0.0
    %280 = vmatpush1.msra.mxu0 %v181
    %281 = vmatprep.subr.mxu0 0.0
    %282 = vmatpush1.msra.mxu0 %v182
    %283 = vmatprep.subr.mxu0 0.0
    %284 = vmatpush1.msra.mxu0 0.0
    %285 = vmatprep.subr.mxu0 0.0
    %286 = vmatpush1.msra.mxu0 0.0
    %287 = vmatprep.subr.mxu0 0.0
    %288 = vmatpush1.msra.mxu0 0.0
    %289 = vmatprep.subr.mxu0 0.0
    %290 = vmatpush1.msra.mxu0 0.0
    %291 = vmatprep.subr.mxu0 0.0
    %292 = vmatpush1.msra.mxu0 0.0
    %293 = vmatprep.subr.mxu0 0.0
    %294 = vmatpush1.msra.mxu0 0.0
    %295 = vmatprep.subr.mxu0 0.0
    %296 = vmatpush1.msra.mxu0 0.0
    %297 = vmatprep.subr.mxu0 0.0
    %298 = vmatpush1.msra.mxu0 0.0
    %299 = vmatprep.subr.mxu0 0.0
    %300 = vmatpush1.msra.mxu0 0.0
    %301 = vmatprep.subr.mxu0 0.0
    %302 = vmatpush1.msra.mxu0 0.0
    %303 = vmatprep.subr.mxu0 0.0
    %304 = vmatpush1.msra.mxu0 0.0
    %305 = vmatprep.subr.mxu0 0.0
    %306 = vmatpush1.msra.mxu0 0.0
    %307 = vmatprep.subr.mxu0 0.0
    %308 = vmatpush1.msra.mxu0 0.0
    %309 = vmatprep.subr.mxu0 0.0
    %310 = vmatpush1.msra.mxu0 0.0
    %311 = vmatprep.subr.mxu0 0.0
    %312 = vmatpush1.msra.mxu0 0.0
    %313 = vmatprep.subr.mxu0 0.0
    %314 = vmatpush1.msra.mxu0 0.0
    %315 = vmatprep.subr.mxu0 0.0
    %316 = vmatpush1.msra.mxu0 0.0
    %317 = vmatprep.subr.mxu0 0.0
    %318 = vmatpush1.msra.mxu0 0.0
    %319 = vmatprep.subr.mxu0 0.0
    %320 = vmatpush1.msra.mxu0 0.0
    %321 = vmatprep.subr.mxu0 0.0
    %322 = vmatpush1.msra.mxu0 0.0
    %323 = vmatprep.subr.mxu0 0.0
    %324 = vmatpush1.msra.mxu0 0.0
    %325 = vmatprep.subr.mxu0 0.0
    %326 = vmatpush1.msra.mxu0 0.0
    %327 = vmatprep.subr.mxu0 0.0
    %328 = vmatpush1.msra.mxu0 0.0
    %329 = vmatprep.subr.mxu0 0.0
    %330 = vmatpush1.msra.mxu0 0.0
    %331 = vmatprep.subr.mxu0 0.0
    %332 = vmatpush1.msra.mxu0 0.0
    %333 = vmatprep.subr.mxu0 0.0
    %334 = vmatpush1.msra.mxu0 0.0
    %335 = vmatprep.subr.mxu0 0.0
    %336 = vmatpush1.msra.mxu0 0.0
    %337 = vmatprep.subr.mxu0 0.0
    %338 = vmatpush1.msra.mxu0 0.0
    %339 = vmatprep.mubr.f32.mxu0 0.0
    %340 = vmatmul.mubr.f32.gmra.mrb[0].mxu0 %v270
    %v341 = vpop.f32.mrb[0].mxu0
    %v342 = vadd.f32 %v261, %v341
    %v343 = vpop.f32.mrb[0].mxu0
    %344 = vmatprep.mubr.f32.mxu0 0.0
    %345 = vmatmul.mubr.f32.gmra.mrb[0].mxu0 %v273
    %v346 = vpop.f32.mrb[0].mxu0
    %v347 = vadd.f32 %v266, %v346
    %v348 = vpop.f32.mrb[0].mxu0
    %349 = vdwg.mxu0
    %v350 = vsel %vm187, %v89, 0.0
    %v351 = vsel %vm187, %v90, 0.0
    %v352 = vadd.f32 %v350, %v351
    %v353 = vrot.slane %v352, 4
    %v354 = vadd.f32 %v352, %v353
    %v355 = vrot.slane %v354, 2
    %v356 = vadd.f32 %v354, %v355
    %v357 = vrot.slane %v356, 1
    %v358 = vadd.f32 %v356, %v357
    %v359 = vld [vmem:[#allocation10] sm:$0xff]
    %v360 = vld [vmem:[#allocation10 + $0x8] sm:$0xff]
    %v361 = vld [vmem:[#allocation10 + $0x10] sm:$0xff]
    %v362 = vld [vmem:[#allocation10 + $0x18] sm:$0xff]
    %v364 = vsel %vm187, %v358, 0
    %366 = vmatprep.subr.mxu0 0.0
    %367 = vmatpush1.msra.mxu0 %v359
    %368 = vmatprep.subr.mxu0 0.0
    %369 = vmatpush1.msra.mxu0 %v360
    %370 = vmatprep.subr.mxu0 0.0
    %371 = vmatpush1.msra.mxu0 %v361
    %372 = vmatprep.subr.mxu0 0.0
    %373 = vmatpush1.msra.mxu0 %v362
    %374 = vmatprep.subr.mxu0 0.0
    %375 = vmatpush1.msra.mxu0 0.0
    %376 = vmatprep.subr.mxu0 0.0
    %377 = vmatpush1.msra.mxu0 0.0
    %378 = vmatprep.subr.mxu0 0.0
    %379 = vmatpush1.msra.mxu0 0.0
    %380 = vmatprep.subr.mxu0 0.0
    %381 = vmatpush1.msra.mxu0 0.0
    %382 = vmatprep.subr.mxu0 0.0
    %383 = vmatpush1.msra.mxu0 0.0
    %384 = vmatprep.subr.mxu0 0.0
    %385 = vmatpush1.msra.mxu0 0.0
    %386 = vmatprep.subr.mxu0 0.0
    %387 = vmatpush1.msra.mxu0 0.0
    %388 = vmatprep.subr.mxu0 0.0
    %389 = vmatpush1.msra.mxu0 0.0
    %390 = vmatprep.subr.mxu0 0.0
    %391 = vmatpush1.msra.mxu0 0.0
    %392 = vmatprep.subr.mxu0 0.0
    %393 = vmatpush1.msra.mxu0 0.0
    %394 = vmatprep.subr.mxu0 0.0
    %395 = vmatpush1.msra.mxu0 0.0
    %396 = vmatprep.subr.mxu0 0.0
    %397 = vmatpush1.msra.mxu0 0.0
    %398 = vmatprep.subr.mxu0 0.0
    %399 = vmatpush1.msra.mxu0 0.0
    %400 = vmatprep.subr.mxu0 0.0
    %401 = vmatpush1.msra.mxu0 0.0
    %402 = vmatprep.subr.mxu0 0.0
    %403 = vmatpush1.msra.mxu0 0.0
    %404 = vmatprep.subr.mxu0 0.0
    %405 = vmatpush1.msra.mxu0 0.0
    %406 = vmatprep.subr.mxu0 0.0
    %407 = vmatpush1.msra.mxu0 0.0
    %408 = vmatprep.subr.mxu0 0.0
    %409 = vmatpush1.msra.mxu0 0.0
    %410 = vmatprep.subr.mxu0 0.0
    %411 = vmatpush1.msra.mxu0 0.0
    %412 = vmatprep.subr.mxu0 0.0
    %413 = vmatpush1.msra.mxu0 0.0
    %414 = vmatprep.subr.mxu0 0.0
    %415 = vmatpush1.msra.mxu0 0.0
    %416 = vmatprep.subr.mxu0 0.0
    %417 = vmatpush1.msra.mxu0 0.0
    %418 = vmatprep.subr.mxu0 0.0
    %419 = vmatpush1.msra.mxu0 0.0
    %420 = vmatprep.subr.mxu0 0.0
    %421 = vmatpush1.msra.mxu0 0.0
    %422 = vmatprep.subr.mxu0 0.0
    %423 = vmatpush1.msra.mxu0 0.0
    %424 = vmatprep.subr.mxu0 0.0
    %425 = vmatpush1.msra.mxu0 0.0
    %426 = vmatprep.subr.mxu0 0.0
    %427 = vmatpush1.msra.mxu0 0.0
    %428 = vmatprep.subr.mxu0 0.0
    %429 = vmatpush1.msra.mxu0 0.0
    %430 = vmatprep.mubr.f32.mxu0 0.0
    %431 = vmatmul.mubr.f32.gmra.mrb[0].mxu0 %v364
    %v432 = vpop.f32.mrb[0].mxu0
    %v433 = vadd.f32 0.0, %v432
    %v434 = vpop.f32.mrb[0].mxu0
    %435 = vdwg.mxu0
    %v436 = vlaneseq
    %v437 = vshrl.u32 %v436, 7
    %v438 = vsub.s32 0, %v437
    %v439 = vrot.slane %v433, %v438
    %v440 = vadd.f32 %v342, %v439
    %v441 = vadd.f32 %v347, %v439
    %442 = vst [vmem:[#allocation11] sm:$0xff] %v440
    %443 = vst [vmem:[#allocation11 + $0x8] sm:$0xff] %v441
    // Predicated region
    $region42: #{tpu_custom_call.1} parent=1 // pred_check
      _
    $region43: #{tpu_custom_call.1} parent=1 // pred_check_branch
      %445 = sbr.rel (0) target = $region45
    $region44: #{tpu_custom_call.1} parent=1 // pred_region
      %s447 = ssub.s32 256, 256
      %448 = vsyncadd [#allocation4], %s447
      %s449 = sshll.u32 [#allocation11], 4
      %s450 = int_to_ptr.vmem [resolvable:$true] %s449
      %455 = dma.vmem_to_hbm [thread:$0]  %s450, 256, %s5, [#allocation4], 128, 128, 8
    $region45: #{tpu_custom_call.1} parent=1 // pred_fallthru
      _
    // Predicated region
    $region46: #{tpu_custom_call.1} parent=1 // pred_check
      _
    $region47: #{tpu_custom_call.1} parent=1 // pred_check_branch
      %457 = sbr.rel (0) target = $region49
    $region48: #{tpu_custom_call.1} parent=1 // pred_region
      %458 = dma.done [#allocation4], 256
    $region49: #{tpu_custom_call.1} parent=1 // pred_fallthru
      _
    %459 = vsyncpa [#allocation3], 1
    %460 = vsyncpa [#allocation6], 1
    %461 = vsyncpa [#allocation9], 1
    %462 = vsyncpa [#allocation4], 1

</llo_original>
